<compile_context>
chip_gen: v6e
topology: v6e:2x2x1
jax: 0.10.0
libtpu: 0.0.40
codegen_flags: <defaults>
</compile_context>

<pallas_src>
import numpy as np
import jax
import jax.numpy as jnp
from jax.experimental import pallas as pl
from jax.experimental.pallas import tpu as pltpu

TAU = 2.0 * np.pi


def quantum_block_kernel(x_ref, w_ref, epi_ref, yr_ref, yi_ref):
    k = pl.program_id(2)

    @pl.when(k == 0)
    def _init():
        yr_ref[...] = jnp.zeros_like(yr_ref)

    # (tm, tk) bf16 @ (tk, tn) bf16 -> f32, accumulated straight into the resident output
    # block (output BlockSpec returns the same (i, j) block for every k).
    yr_ref[...] += jnp.dot(x_ref[...], w_ref[...], preferred_element_type=jnp.float32)

    # Epilogue on the last k-step only: complex modulation + pre-scaled bias, two FMAs.
    @pl.when(k == pl.num_programs(2) - 1)
    def _finalize():
        e = epi_ref[...]                      # (8, tn): rows = [sr, si, b*sr, b*si, 0, 0, 0, 0]
        lr = yr_ref[...]                      # full real linear result (no bias yet)
        yi_ref[...] = lr * e[1:2, :] + e[3:4, :]
        yr_ref[...] = lr * e[0:1, :] + e[2:3, :]


def _round_up(x, m):
    return ((x + m - 1) // m) * m


def _pick_tile(dim, preferred, align):
    """Largest multiple of `align` that divides `dim` and is <= preferred; else the full dim
    (block_shape equal to the array dim is always legal)."""
    t = (min(preferred, dim) // align) * align
    while t >= align:
        if dim % t == 0:
            return t
        t -= align
    return dim


def _vmem_limit_bytes():
    """Generation-aware scoped-VMEM budget: half of physical VMEM (64 MiB on v5e/v6e 128 MiB
    parts, 32 MiB on v7x 64 MiB parts), never below the 32 MiB default."""
    try:
        cap = getattr(pltpu.get_tpu_info(), "vmem_capacity_bytes", 64 * 1024 * 1024)
    except Exception:
        cap = 64 * 1024 * 1024
    return max(32 * 1024 * 1024, cap // 2)


def prepare_params(w, b, phase, amplitude):
    """One-time (per parameter load) preprocessing -- hoisted out of the per-call forward path.

    Returns:
      w_t : (F_in, F_out) bfloat16   -- Re(W)^T, MXU-ready (no in-kernel transpose)
      epi : (8, F_out)   float32     -- rows [Re(s), Im(s), Re(b)*Re(s), Re(b)*Im(s), 0, 0, 0, 0]
    """
    f_out, f_in = w.shape
    w_np = np.asarray(w)
    b_np = np.asarray(b)
    # Real-only fast path is valid only while the cast-from-real invariant holds.
    assert np.abs(w_np.imag).max() == 0.0 and np.abs(b_np.imag).max() == 0.0, \
        "real-only fast path requires Im(W) == Im(b) == 0"

    w_t = jnp.asarray(np.ascontiguousarray(w_np.real.T), dtype=jnp.bfloat16)   # (F_in, F_out)

    scale = amplitude * jnp.exp(1j * phase)                                    # complex64 (F_out,)
    sr = jnp.real(scale).astype(jnp.float32)
    si = jnp.imag(scale).astype(jnp.float32)
    br = jnp.asarray(b_np.real, dtype=jnp.float32)
    pad = jnp.zeros((f_out,), jnp.float32)
    epi = jnp.stack([sr, si, br * sr, br * si, pad, pad, pad, pad], axis=0)    # (8, F_out)
    return w_t, epi


def quantum_neural_block(x, w_t, epi, *, tm=None, tn=None, tk=None, return_planar=False):
    """x: (B, F_in) float32; w_t: (F_in, F_out) bfloat16 (from prepare_params);
       epi: (8, F_out) float32 (from prepare_params)."""
    B, f_in = x.shape
    f_in_w, f_out = w_t.shape
    assert f_in_w == f_in and epi.shape == (8, f_out)

    # Tile selection: biggest M tile we can (W is re-streamed once per M tile, so arithmetic
    # intensity per W byte ~ tm flop/byte); bf16-native 16-row alignment on M; 128-aligned N/K.
    tm = tm if tm is not None else min(256, _round_up(B, 16))
    B_pad = _round_up(B, tm)
    tn = tn if tn is not None else _pick_tile(f_out, 512, 128)
    tk = tk if tk is not None else _pick_tile(f_in, 1024, 128)
    # Megacore (v7x, 2 TCs/chip): make sure the parallel (i, j) axes give >= 2 blocks.
    # Splitting j is bandwidth-free (each j slab of W is read once either way).
    if (B_pad // tm) == 1 and (f_out // tn) == 1 and tn % 256 == 0:
        tn //= 2
    assert B_pad % tm == 0 and f_out % tn == 0 and f_in % tk == 0

    xr = x.astype(jnp.bfloat16)            # per-call cast is unavoidable (x changes every call)
    if B_pad != B:
        xr = jnp.pad(xr, ((0, B_pad - B), (0, 0)))

    grid = (B_pad // tm, f_out // tn, f_in // tk)      # reduction axis (k) last

    cost = pl.CostEstimate(
        flops=2 * B_pad * f_in * f_out + 4 * B_pad * f_out,
        transcendentals=0,
        bytes_accessed=(B_pad * f_in * 2 * (f_out // tn)          # x re-read per j block
                        + f_in * f_out * 2 * (B_pad // tm)        # W re-read per i block
                        + 8 * f_out * 4 * (B_pad // tm)
                        + 2 * B_pad * f_out * 4),
    )

    yr, yi = pl.pallas_call(
        quantum_block_kernel,
        out_shape=(jax.ShapeDtypeStruct((B_pad, f_out), jnp.float32),
                   jax.ShapeDtypeStruct((B_pad, f_out), jnp.float32)),
        grid_spec=pltpu.PrefetchScalarGridSpec(
            num_scalar_prefetch=0,
            grid=grid,
            in_specs=[
                pl.BlockSpec((tm, tk), lambda i, j, k: (i, k)),   # x (bf16)
                pl.BlockSpec((tk, tn), lambda i, j, k: (k, j)),   # Re(W)^T (bf16), MXU-ready
                pl.BlockSpec((8, tn), lambda i, j, k: (0, j)),    # packed epilogue slab (f32)
            ],
            out_specs=(pl.BlockSpec((tm, tn), lambda i, j, k: (i, j)),
                       pl.BlockSpec((tm, tn), lambda i, j, k: (i, j))),
        ),
        compiler_params=pltpu.CompilerParams(
            dimension_semantics=("parallel", "parallel", "arbitrary"),
            vmem_limit_bytes=_vmem_limit_bytes()),
        cost_estimate=cost,
    )(xr, w_t, epi)

    if B_pad != B:
        yr = yr[:B]
        yi = yi[:B]
    if return_planar:
        return yr, yi                       # avoids the 8 B/elem complex interleave entirely
    return jax.lax.complex(yr, yi)          # complex64, matches torch.cfloat


def init_params(key, in_features, out_features):
    """Deterministic synthetic parameters with the shapes/dtypes the module's __init__ implies."""
    k_w, k_b, k_pr, k_pi, k_ar, k_ai = jax.random.split(key, 6)
    bound = 1.0 / np.sqrt(in_features)
    # nn.Linear weights/bias are real floats cast to cfloat -> imaginary part is zero.
    w = jax.random.uniform(k_w, (out_features, in_features), jnp.float32,
                           minval=-bound, maxval=bound).astype(jnp.complex64)
    b = jax.random.uniform(k_b, (out_features,), jnp.float32,
                           minval=-bound, maxval=bound).astype(jnp.complex64)
    # phase = randn(cfloat) * TAU (complex), amplitude = rand(cfloat) (complex).
    phase = (jax.random.normal(k_pr, (out_features,), jnp.float32)
             + 1j * jax.random.normal(k_pi, (out_features,), jnp.float32)) * TAU
    amplitude = (jax.random.uniform(k_ar, (out_features,), jnp.float32)
                 + 1j * jax.random.uniform(k_ai, (out_features,), jnp.float32))
    return w, b, phase.astype(jnp.complex64), amplitude.astype(jnp.complex64)


def _check(y, x, w, b, phase, amplitude, tol=2e-2):
    """Compare against the pure-JAX reference with a per-element magnitude bound that
    accounts for bf16 MXU inputs and the (possibly huge) complex modulation magnitude."""
    y_ref = (x.astype(jnp.complex64) @ w.T + b) * amplitude * jnp.exp(1j * phase)
    y_np = np.asarray(y)
    y_ref_np = np.asarray(y_ref)
    scale_np = np.abs(np.asarray(amplitude * jnp.exp(1j * phase))).astype(np.float64)
    lin_mag = (np.abs(np.asarray(x)).astype(np.float64)
               @ np.abs(np.asarray(jnp.real(w))).astype(np.float64).T
               + np.abs(np.asarray(jnp.real(b))).astype(np.float64))
    bound = lin_mag * scale_np + 1e-6
    rel = np.abs(y_np.astype(np.complex128) - y_ref_np.astype(np.complex128)) / bound
    assert rel.max() < tol, f"max bound-relative error {rel.max():.3e}"


if __name__ == "__main__":
    B, F_IN, F_OUT = 32, 256, 256

    key = jax.random.PRNGKey(0)
    k_x, k_p = jax.random.split(key)
    x = jax.random.normal(k_x, (B, F_IN), jnp.float32)
    w, b, phase, amplitude = init_params(k_p, F_IN, F_OUT)

    # One-time weight/epilogue preprocessing (transpose + bf16 cast + bias/scale packing)
    # hoisted out of the per-call forward path.
    w_t, epi = prepare_params(w, b, phase, amplitude)

    fwd = jax.jit(quantum_neural_block,
                  static_argnames=("tm", "tn", "tk", "return_planar"))

    # 1) Default performance-sized tiles (grid (1, 2, 1): j split so both v7x TCs get work).
    y = jax.block_until_ready(fwd(x, w_t, epi))
    _check(y, x, w, b, phase, amplitude)

    # 2) Explicit small tiles to exercise the full (2, 2, 2) grid + resident-output k-accumulation.
    y_g = jax.block_until_ready(fwd(x, w_t, epi, tm=16, tn=128, tk=128))
    _check(y_g, x, w, b, phase, amplitude)

    # 3) Non-divisible batch -> M-padding path.
    x_odd = x[:10]
    y_odd = jax.block_until_ready(fwd(x_odd, w_t, epi))
    _check(y_odd, x_odd, w, b, phase, amplitude)

    print("KERNEL_OK")
</pallas_src>

<mosaic_0001>
module attributes {stable_mosaic.version = 11 : i64} {
  func.func @quantum_block_kernel(%arg0: i32, %arg1: i32, %arg2: i32, %arg3: memref<32x256xbf16, #tpu.memory_space<vmem>>, %arg4: memref<256x128xbf16, #tpu.memory_space<vmem>>, %arg5: memref<8x128xf32, #tpu.memory_space<vmem>>, %arg6: memref<32x128xf32, #tpu.memory_space<vmem>>, %arg7: memref<32x128xf32, #tpu.memory_space<vmem>>) attributes {dimension_semantics = [#tpu.dimension_semantics<parallel>, #tpu.dimension_semantics<parallel>, #tpu.dimension_semantics<arbitrary>], iteration_bounds = array<i64: 1, 2, 1>, scalar_prefetch = 0 : i64, scratch_operands = 0 : i64, tpu.core_type = #tpu.core_type<tc>, window_params = [{transform_indices = @transform_0, window_bounds = array<i64: 32, 256>}, {transform_indices = @transform_1, window_bounds = array<i64: 256, 128>}, {transform_indices = @transform_2, window_bounds = array<i64: 8, 128>}, {transform_indices = @transform_3, window_bounds = array<i64: 32, 128>}, {transform_indices = @transform_4, window_bounds = array<i64: 32, 128>}]} {
    %c0_i32 = arith.constant 0 : i32
    %0 = arith.cmpi eq, %arg2, %c0_i32 : i32
    %1 = arith.extui %0 : i1 to i32
    %c0_i32_0 = arith.constant 0 : i32
    %2 = arith.cmpi ne, %1, %c0_i32_0 : i32
    scf.if %2 {
      %cst_10 = arith.constant 0.000000e+00 : f32
      %12 = vector.broadcast %cst_10 : f32 to vector<32x128xf32>
      %c0_11 = arith.constant 0 : index
      %c0_12 = arith.constant 0 : index
      %13 = vector.load %arg6[%c0_11, %c0_12] : memref<32x128xf32, #tpu.memory_space<vmem>>, vector<32x128xf32>
      tpu.vector_store %arg6[%c0_11, %c0_12], %12 {strides = array<i32>} : memref<32x128xf32, #tpu.memory_space<vmem>>, vector<32x128xf32>,
    } else {
    }
    %c0 = arith.constant 0 : index
    %c0_1 = arith.constant 0 : index
    %3 = vector.load %arg6[%c0, %c0_1] : memref<32x128xf32, #tpu.memory_space<vmem>>, vector<32x128xf32>
    %c0_2 = arith.constant 0 : index
    %c0_3 = arith.constant 0 : index
    %4 = vector.load %arg3[%c0_2, %c0_3] : memref<32x256xbf16, #tpu.memory_space<vmem>>, vector<32x256xbf16>
    %c0_4 = arith.constant 0 : index
    %c0_5 = arith.constant 0 : index
    %5 = vector.load %arg4[%c0_4, %c0_5] : memref<256x128xbf16, #tpu.memory_space<vmem>>, vector<256x128xbf16>
    %cst = arith.constant dense<0.000000e+00> : vector<32x128xf32>
    %6 = tpu.matmul %4, %5, %cst {dimension_numbers = #tpu.dot_dimension_numbers<[1], [0], [0], [1], [0, 0, 1, 1], [], []>} : vector<32x256xbf16>, vector<256x128xbf16>, vector<32x128xf32> -> vector<32x128xf32>
    %7 = arith.addf %3, %6 : vector<32x128xf32>
    %c0_6 = arith.constant 0 : index
    %c0_7 = arith.constant 0 : index
    %8 = vector.load %arg6[%c0_6, %c0_7] : memref<32x128xf32, #tpu.memory_space<vmem>>, vector<32x128xf32>
    tpu.vector_store %arg6[%c0_6, %c0_7], %7 {strides = array<i32>} : memref<32x128xf32, #tpu.memory_space<vmem>>, vector<32x128xf32>,
    %c0_i32_8 = arith.constant 0 : i32
    %9 = arith.cmpi eq, %arg2, %c0_i32_8 : i32
    %10 = arith.extui %9 : i1 to i32
    %c0_i32_9 = arith.constant 0 : i32
    %11 = arith.cmpi ne, %10, %c0_i32_9 : i32
    scf.if %11 {
      %c0_10 = arith.constant 0 : index
      %c0_11 = arith.constant 0 : index
      %12 = vector.load %arg5[%c0_10, %c0_11] : memref<8x128xf32, #tpu.memory_space<vmem>>, vector<8x128xf32>
      %c0_12 = arith.constant 0 : index
      %c0_13 = arith.constant 0 : index
      %13 = vector.load %arg6[%c0_12, %c0_13] : memref<32x128xf32, #tpu.memory_space<vmem>>, vector<32x128xf32>
      %14 = vector.extract_strided_slice %12 {offsets = [1, 0], sizes = [1, 128], strides = [1, 1]} : vector<8x128xf32> to vector<1x128xf32>
      %15 = vector.broadcast %14 : vector<1x128xf32> to vector<32x128xf32>
      %16 = arith.mulf %13, %15 : vector<32x128xf32>
      %17 = vector.extract_strided_slice %12 {offsets = [3, 0], sizes = [1, 128], strides = [1, 1]} : vector<8x128xf32> to vector<1x128xf32>
      %18 = vector.broadcast %17 : vector<1x128xf32> to vector<32x128xf32>
      %19 = arith.addf %16, %18 : vector<32x128xf32>
      %c0_14 = arith.constant 0 : index
      %c0_15 = arith.constant 0 : index
      %20 = vector.load %arg7[%c0_14, %c0_15] : memref<32x128xf32, #tpu.memory_space<vmem>>, vector<32x128xf32>
      tpu.vector_store %arg7[%c0_14, %c0_15], %19 {strides = array<i32>} : memref<32x128xf32, #tpu.memory_space<vmem>>, vector<32x128xf32>,
      %21 = vector.extract_strided_slice %12 {offsets = [0, 0], sizes = [1, 128], strides = [1, 1]} : vector<8x128xf32> to vector<1x128xf32>
      %22 = vector.broadcast %21 : vector<1x128xf32> to vector<32x128xf32>
      %23 = arith.mulf %13, %22 : vector<32x128xf32>
      %24 = vector.extract_strided_slice %12 {offsets = [2, 0], sizes = [1, 128], strides = [1, 1]} : vector<8x128xf32> to vector<1x128xf32>
      %25 = vector.broadcast %24 : vector<1x128xf32> to vector<32x128xf32>
      %26 = arith.addf %23, %25 : vector<32x128xf32>
      %c0_16 = arith.constant 0 : index
      %c0_17 = arith.constant 0 : index
      %27 = vector.load %arg6[%c0_16, %c0_17] : memref<32x128xf32, #tpu.memory_space<vmem>>, vector<32x128xf32>
      tpu.vector_store %arg6[%c0_16, %c0_17], %26 {strides = array<i32>} : memref<32x128xf32, #tpu.memory_space<vmem>>, vector<32x128xf32>,
    } else {
    }
    return
  }
  func.func @transform_0(%arg0: i32, %arg1: i32, %arg2: i32) -> (i32, i32) {
    %c0_i32 = arith.constant 0 : i32
    return %arg0, %arg2 : i32, i32
  }
  func.func @transform_1(%arg0: i32, %arg1: i32, %arg2: i32) -> (i32, i32) {
    %c0_i32 = arith.constant 0 : i32
    return %arg2, %arg1 : i32, i32
  }
  func.func @transform_2(%arg0: i32, %arg1: i32, %arg2: i32) -> (i32, i32) {
    %c0_i32 = arith.constant 0 : i32
    %c0_i32_0 = arith.constant 0 : i32
    return %c0_i32, %arg1 : i32, i32
  }
  func.func @transform_3(%arg0: i32, %arg1: i32, %arg2: i32) -> (i32, i32) {
    %c0_i32 = arith.constant 0 : i32
    return %arg0, %arg1 : i32, i32
  }
  func.func @transform_4(%arg0: i32, %arg1: i32, %arg2: i32) -> (i32, i32) {
    %c0_i32 = arith.constant 0 : i32
    return %arg0, %arg1 : i32, i32
  }
}

</mosaic_0001>

<llo_original>
// kernel: custom-call
$region0: #{custom-call}
  %s0 = inlined_call_operand.vmem [shape: f32[32,256], index: 0, kind: input, shape index: {}]
  %s1 = inlined_call_operand.vmem [shape: f32[32,256], index: 1, kind: input, shape index: {}]
  %s2 = inlined_call_operand.hbm [shape: c64[32,256], index: 2, kind: output, shape index: {}]
  %s3 = scalar_lea.hbm %s2, 1024
  $region1: #{custom-call} parent=0
    #allocation0 [shape = 's32[1]{0}', space=sflag, size = 0x4, scoped, tag = 'scoped memory for custom-call']
    %4 = vsyncpa [#allocation0], 0
    %s5 = sshll.u32 %s0, 4
    %s6 = int_to_ptr.vmem [resolvable:$true] %s5
    %8 = dma.vmem_to_hbm [thread:$0]  %s6, 1024, %s2, [#allocation0]
    %9 = dma.done [#allocation0], 1024
    %10 = vsyncpa [#allocation0], 1
  $region2: #{custom-call} parent=0
    #allocation1 [shape = 's32[1]{0}', space=sflag, size = 0x4, scoped, tag = 'scoped memory for custom-call']
    %11 = vsyncpa [#allocation1], 0
    %s12 = sshll.u32 %s1, 4
    %s13 = int_to_ptr.vmem [resolvable:$true] %s12
    %15 = dma.vmem_to_hbm [thread:$0]  %s13, 1024, %s3, [#allocation1]
    %16 = dma.done [#allocation1], 1024
    %17 = vsyncpa [#allocation1], 1

// kernel: quantum_neural_block.1
$region0: #{quantum_neural_block.1}
  #allocation0 [shape = 'u32[]', space=smem, size = 0x4, offset = 0x4, fixed_abs, tag = 'smem constant byte address 0x4 - core index']
  #allocation1 [shape = 'u32[144,128]{1,0:T(1,128)}', space=vmem, size = 0x12000, scoped, tag = 'internal scratch']
  %s0 = inlined_call_operand.vmem [shape: bf16[32,256], index: 0, kind: input, shape index: {}]
  %s1 = inlined_call_operand.hbm [shape: bf16[256,256], index: 1, kind: input, shape index: {}]
  %s2 = inlined_call_operand.vmem [shape: f32[8,256], index: 2, kind: input, shape index: {}]
  %s3 = inlined_call_operand.vmem [shape: f32[32,256], index: 3, kind: output, shape index: {0}]
  %s4 = inlined_call_operand.vmem [shape: f32[32,256], index: 4, kind: output, shape index: {1}]
  %5 = xla_tuple %s3, %s4
  %s6 = sld [smem:[#allocation0]]
  $region133: #{quantum_neural_block.1} parent=0
    _
  %s8 = ssub.s32 1, %s6
  %s9 = scalar_select 0, %s8, %s6
  $region1: #{quantum_neural_block.1} parent=0
    #allocation2 [shape = 'u8[131072]{0}', space=vmem, size = 0x20000, scoped, tag = 'input window, operand 1']
    #allocation3 [shape = 's32[2]{0}', space=sflag, size = 0x8, scoped, tag = 'scoped memory for quantum_neural_block.1']
    #allocation4 [shape = 'u8[32768]{0}', space=vmem, size = 0x8000, scoped, tag = 'output window, operand 0']
    #allocation5 [shape = 'u8[32768]{0}', space=vmem, size = 0x8000, scoped, tag = 'output window, operand 1']
    %10 = vsyncpa [#allocation3], 0
    %s11 = scalar_lea.sflag [#allocation3], 1
    %12 = vsyncpa %s11, 0
    loop: start=0, step=1, limit=4
    $region2: #{quantum_neural_block.1} parent=1 // loop_pre_header
      _
    $region3: #{quantum_neural_block.1} parent=1 // loop_header
      %s14 = sphi 0, %s18
      %p15 = scmp.ge.s32.totalorder %s14, 4
      %s21 = sphi 0, %s40
      %s22 = sphi 0, %s36
      %s23 = sphi 0, %s32
      %s24 = sphi 0, %s21
      %s25 = sphi 0, %s22
      %s26 = sphi 0, %s23
      %s27 = sphi 0, %s24
      %s28 = sphi 0, %s25
      %s29 = sphi 0, %s26
      %s45 = sphi 0, %s47
      %s48 = sphi 0, %s45
      %s49 = sphi 0, %s48
      %s65 = sphi 0, %s49
      %s73 = sphi 0, %s75
      %s76 = sphi 0, %s73
      %s77 = sphi 0, %s76
      %s93 = sphi 0, %s77
      %s99 = sphi 0, %s101
      %s102 = sphi 0, %s99
      %s103 = sphi 0, %s102
      %s119 = sphi 0, %s103
      %s127 = sphi 0, %s129
      %s130 = sphi 0, %s127
      %s131 = sphi 0, %s130
      %s147 = sphi 0, %s131
      %s155 = sphi 0, %s157
      %s158 = sphi 0, %s155
      %s159 = sphi 0, %s158
      %s175 = sphi 0, %s159
    $region4: #{quantum_neural_block.1} parent=1 // loop_header_branch
      %17 = sbr.rel (%p15) target = $region8
    $region5: #{quantum_neural_block.1} parent=1 // loop_body
      %s19 = ssub.s32 %s14, 1
      %s20 = ssub.s32 %s14, 2
      %s30 = sadd.s32 1, %s23
      %p31 = scmp.ge.s32.totalorder %s30, 1
      %s32 = scalar_select %p31, 0, %s30
      %s33 = sadd.s32 1, %s22
      %s34 = scalar_select %p31, %s33, %s22
      %p35 = scmp.ge.s32.totalorder %s34, 2
      %s36 = scalar_select %p35, 0, %s34
      %s37 = sadd.s32 1, %s21
      %s38 = scalar_select %p35, %s37, %s21
      %p39 = scmp.ge.s32.totalorder %s38, 1
      %s40 = scalar_select %p39, 0, %s38
      %s41 = ssub.s32 %s21, %s40
      %s42 = ssub.s32 %s23, %s32
      %s43 = sor.u32 %s41, %s42
      %p44 = scmp.eq.s32.totalorder %s43, 0
      %s46 = sadd.s32 %s45, 1
      %s47 = scalar_select %p44, %s45, %s46
      %p50 = pneg %p44
      %p51 = scmp.eq.s32.totalorder %s14, 1
      %p52 = por %p50, %p51
      %p53 = scmp.ne.s32.totalorder %s45, %s48
      %p54 = scmp.eq.s32.totalorder %s14, 0
      %p55 = por %p53, %p54
      %p56 = scmp.ne.s32.totalorder %s45, %s48
      %p57 = scmp.eq.s32.totalorder %s19, 1
      %p58 = por %p56, %p57
      %p59 = scmp.ne.s32.totalorder %s48, %s49
      %p60 = scmp.eq.s32.totalorder %s19, 0
      %p61 = por %p59, %p60
      %p62 = scmp.ne.s32.totalorder %s48, %s49
      %p63 = scmp.eq.s32.totalorder %s20, 1
      %p64 = por %p62, %p63
      %p66 = scmp.ne.s32.totalorder %s49, %s65
      %p67 = scmp.eq.s32.totalorder %s20, 0
      %p68 = por %p66, %p67
      %s69 = ssub.s32 %s23, %s32
      %s70 = ssub.s32 %s22, %s36
      %s71 = sor.u32 %s69, %s70
      %p72 = scmp.eq.s32.totalorder %s71, 0
      %s74 = sadd.s32 %s73, 1
      %s75 = scalar_select %p72, %s73, %s74
      %p78 = pneg %p72
      %p79 = scmp.eq.s32.totalorder %s14, 1
      %p80 = por %p78, %p79
      %p81 = scmp.ne.s32.totalorder %s73, %s76
      %p82 = scmp.eq.s32.totalorder %s14, 0
      %p83 = por %p81, %p82
      %p84 = scmp.ne.s32.totalorder %s73, %s76
      %p85 = scmp.eq.s32.totalorder %s19, 1
      %p86 = por %p84, %p85
      %p87 = scmp.ne.s32.totalorder %s76, %s77
      %p88 = scmp.eq.s32.totalorder %s19, 0
      %p89 = por %p87, %p88
      %p90 = scmp.ne.s32.totalorder %s76, %s77
      %p91 = scmp.eq.s32.totalorder %s20, 1
      %p92 = por %p90, %p91
      %p94 = scmp.ne.s32.totalorder %s77, %s93
      %p95 = scmp.eq.s32.totalorder %s20, 0
      %p96 = por %p94, %p95
      %s97 = ssub.s32 %s22, %s36
      %p98 = scmp.eq.s32.totalorder %s97, 0
      %s100 = sadd.s32 %s99, 1
      %s101 = scalar_select %p98, %s99, %s100
      %p104 = pneg %p98
      %p105 = scmp.eq.s32.totalorder %s14, 1
      %p106 = por %p104, %p105
      %p107 = scmp.ne.s32.totalorder %s99, %s102
      %p108 = scmp.eq.s32.totalorder %s14, 0
      %p109 = por %p107, %p108
      %p110 = scmp.ne.s32.totalorder %s99, %s102
      %p111 = scmp.eq.s32.totalorder %s19, 1
      %p112 = por %p110, %p111
      %p113 = scmp.ne.s32.totalorder %s102, %s103
      %p114 = scmp.eq.s32.totalorder %s19, 0
      %p115 = por %p113, %p114
      %p116 = scmp.ne.s32.totalorder %s102, %s103
      %p117 = scmp.eq.s32.totalorder %s20, 1
      %p118 = por %p116, %p117
      %p120 = scmp.ne.s32.totalorder %s103, %s119
      %p121 = scmp.eq.s32.totalorder %s20, 0
      %p122 = por %p120, %p121
      %s123 = ssub.s32 %s21, %s40
      %s124 = ssub.s32 %s22, %s36
      %s125 = sor.u32 %s123, %s124
      %p126 = scmp.eq.s32.totalorder %s125, 0
      %s128 = sadd.s32 %s127, 1
      %s129 = scalar_select %p126, %s127, %s128
      %p132 = pneg %p126
      %p133 = scmp.eq.s32.totalorder %s14, 1
      %p134 = por %p132, %p133
      %p135 = scmp.ne.s32.totalorder %s127, %s130
      %p136 = scmp.eq.s32.totalorder %s14, 0
      %p137 = por %p135, %p136
      %p138 = scmp.ne.s32.totalorder %s127, %s130
      %p139 = scmp.eq.s32.totalorder %s19, 1
      %p140 = por %p138, %p139
      %p141 = scmp.ne.s32.totalorder %s130, %s131
      %p142 = scmp.eq.s32.totalorder %s19, 0
      %p143 = por %p141, %p142
      %p144 = scmp.ne.s32.totalorder %s130, %s131
      %p145 = scmp.eq.s32.totalorder %s20, 1
      %p146 = por %p144, %p145
      %p148 = scmp.ne.s32.totalorder %s131, %s147
      %p149 = scmp.eq.s32.totalorder %s20, 0
      %p150 = por %p148, %p149
      %s151 = ssub.s32 %s21, %s40
      %s152 = ssub.s32 %s22, %s36
      %s153 = sor.u32 %s151, %s152
      %p154 = scmp.eq.s32.totalorder %s153, 0
      %s156 = sadd.s32 %s155, 1
      %s157 = scalar_select %p154, %s155, %s156
      %p160 = pneg %p154
      %p161 = scmp.eq.s32.totalorder %s14, 1
      %p162 = por %p160, %p161
      %p163 = scmp.ne.s32.totalorder %s155, %s158
      %p164 = scmp.eq.s32.totalorder %s14, 0
      %p165 = por %p163, %p164
      %p166 = scmp.ne.s32.totalorder %s155, %s158
      %p167 = scmp.eq.s32.totalorder %s19, 1
      %p168 = por %p166, %p167
      %p169 = scmp.ne.s32.totalorder %s158, %s159
      %p170 = scmp.eq.s32.totalorder %s19, 0
      %p171 = por %p169, %p170
      %p172 = scmp.ne.s32.totalorder %s158, %s159
      %p173 = scmp.eq.s32.totalorder %s20, 1
      %p174 = por %p172, %p173
      %p176 = scmp.ne.s32.totalorder %s159, %s175
      %p177 = scmp.eq.s32.totalorder %s20, 0
      %p178 = por %p176, %p177
      %p179 = scmp.le.s32.totalorder 1, %s14
      %p180 = scmp.lt.s32.totalorder %s14, 3
      %p181 = pnand %p179, %p180
      %p182 = pneg %p181
      // Predicated region
      $region9: #{quantum_neural_block.1} parent=5 // pred_check
        _
      $region10: #{quantum_neural_block.1} parent=5 // pred_check_branch
        %184 = sbr.rel (%p181) target = $region12
      $region11: #{quantum_neural_block.1} parent=5 // pred_region
        %s185 = ssub.s32 %s14, 1
        // Predicated region
        $region13: #{quantum_neural_block.1} parent=11 // pred_check
          %p186 = pneg %p61
        $region14: #{quantum_neural_block.1} parent=11 // pred_check_branch
          %188 = sbr.rel (%p186) target = $region16
        $region15: #{quantum_neural_block.1} parent=11 // pred_region
          %s189 = smul.u32 4, %s24
          %s190 = smul.u32 2, %s26
          %p191 = scmp.lt.s32.totalorder %s189, 3
          %s192 = scalar_select %p191, %s189, 3
          %p193 = scmp.lt.s32.totalorder %s190, 1
          %s194 = scalar_select %p193, %s190, 1
          %s195 = smul.addr %s192, 2
          %s196 = sadd.s32 %s194, %s195
          %s197 = smul.addr %s196, 4
          %s198 = scalar_lea.vmem %s0, %s197
          %s199 = smul.u32 4, %s24
          %s200 = smul.u32 2, %s26
        $region16: #{quantum_neural_block.1} parent=11 // pred_fallthru
          _
      $region12: #{quantum_neural_block.1} parent=5 // pred_fallthru
        _
      %p201 = scmp.lt.s32.totalorder %s14, 2
      // Predicated region
      $region17: #{quantum_neural_block.1} parent=5 // pred_check
        %p202 = pneg %p201
      $region18: #{quantum_neural_block.1} parent=5 // pred_check_branch
        %204 = sbr.rel (%p202) target = $region20
      $region19: #{quantum_neural_block.1} parent=5 // pred_region
        // Predicated region
        $region21: #{quantum_neural_block.1} parent=19 // pred_check
          %p205 = pneg %p83
        $region22: #{quantum_neural_block.1} parent=19 // pred_check_branch
          %207 = sbr.rel (%p205) target = $region24
        $region23: #{quantum_neural_block.1} parent=19 // pred_region
          %s208 = sand.u32 %s73, 1
          %s209 = scalar_lea.sflag [#allocation3], %s208
          %s210 = sand.u32 %s73, 1
          %s211 = smul.addr %s210, 128
          %s212 = scalar_lea.vmem [#allocation2], %s211
          %s213 = smul.u32 32, %s23
          %s215 = ssub.s32 2048, 2048
          %216 = vsyncadd %s209, %s215
          %s217 = smul.addr %s213, 2
          %s218 = sadd.s32 %s22, %s217
          %s219 = smul.addr %s218, 64
          %s220 = scalar_lea.hbm %s1, %s219
          %s221 = sshll.u32 %s212, 4
          %s222 = int_to_ptr.vmem [resolvable:$true] %s221
          %227 = dma.hbm_to_vmem [thread:$0]  %s220, 2048, %s222, %s209, 128, 64, 4
        $region24: #{quantum_neural_block.1} parent=19 // pred_fallthru
          _
        // Predicated region
        $region25: #{quantum_neural_block.1} parent=19 // pred_check
          %p228 = pneg %p109
        $region26: #{quantum_neural_block.1} parent=19 // pred_check_branch
          %230 = sbr.rel (%p228) target = $region28
        $region27: #{quantum_neural_block.1} parent=19 // pred_region
          %p231 = scmp.lt.s32.totalorder %s22, 1
          %s232 = scalar_select %p231, %s22, 1
          %s233 = smul.addr %s232, 8
          %s234 = scalar_lea.vmem %s2, %s233
        $region28: #{quantum_neural_block.1} parent=19 // pred_fallthru
          _
      $region20: #{quantum_neural_block.1} parent=5 // pred_fallthru
        _
      %p235 = scmp.le.s32.totalorder 1, %s14
      %p236 = scmp.lt.s32.totalorder %s14, 3
      %p237 = pnand %p235, %p236
      %p238 = pneg %p237
      // Predicated region
      $region29: #{quantum_neural_block.1} parent=5 // pred_check
        _
      $region30: #{quantum_neural_block.1} parent=5 // pred_check_branch
        %240 = sbr.rel (%p237) target = $region32
      $region31: #{quantum_neural_block.1} parent=5 // pred_region
        %s241 = ssub.s32 %s14, 1
        %s242 = sand.u32 %s76, 1
        %s243 = scalar_lea.sflag [#allocation3], %s242
        %s244 = sand.u32 %s76, 1
        %s245 = smul.addr %s244, 128
        %s246 = scalar_lea.vmem [#allocation2], %s245
        // Predicated region
        $region33: #{quantum_neural_block.1} parent=31 // pred_check
          %p247 = pneg %p89
        $region34: #{quantum_neural_block.1} parent=31 // pred_check_branch
          %249 = sbr.rel (%p247) target = $region36
        $region35: #{quantum_neural_block.1} parent=31 // pred_region
          %250 = dma.done %s243, 2048
        $region36: #{quantum_neural_block.1} parent=31 // pred_fallthru
          _
        %s251 = smul.u32 4, %s24
        %s252 = smul.u32 2, %s26
        %p253 = scmp.lt.s32.totalorder %s251, 3
        %s254 = scalar_select %p253, %s251, 3
        %p255 = scmp.lt.s32.totalorder %s252, 1
        %s256 = scalar_select %p255, %s252, 1
        %s257 = smul.addr %s254, 2
        %s258 = sadd.s32 %s256, %s257
        %s259 = smul.addr %s258, 4
        %s260 = scalar_lea.vmem %s0, %s259
        %p261 = pneg %p61
        %p262 = pneg %p58
        %s263 = sand.u32 %s76, 1
        %s264 = scalar_lea.sflag [#allocation3], %s263
        %s265 = sand.u32 %s76, 1
        %s266 = smul.addr %s265, 128
        %s267 = scalar_lea.vmem [#allocation2], %s266
        %p268 = pneg %p89
        %p269 = pneg %p86
        %p270 = scmp.lt.s32.totalorder %s25, 1
        %s271 = scalar_select %p270, %s25, 1
        %s272 = smul.addr %s271, 8
        %s273 = scalar_lea.vmem %s2, %s272
        %p274 = pneg %p115
        %p275 = pneg %p112
        %p276 = pneg %p143
        %p277 = pneg %p140
        %s278 = sand.u32 %s130, 1
        %s279 = sand.u32 %s130, 1
        %s280 = smul.addr %s279, 32
        %s281 = scalar_lea.vmem [#allocation4], %s280
        %p282 = pneg %p171
        %p283 = pneg %p168
        %s284 = sand.u32 %s158, 1
        %s285 = sand.u32 %s158, 1
        %s286 = smul.addr %s285, 32
        %s287 = scalar_lea.vmem [#allocation5], %s286
        %s288 = smul.u32 4, %s24
        %s289 = smul.u32 2, %s26
        %p290 = scmp.lt.s32.totalorder %s288, 3
        %s291 = scalar_select %p290, %s288, 3
        %p292 = scmp.lt.s32.totalorder %s289, 1
        %s293 = scalar_select %p292, %s289, 1
        %s294 = smul.addr %s291, 2
        %s295 = sadd.s32 %s293, %s294
        %s296 = smul.addr %s295, 4
        %s297 = scalar_lea.vmem %s0, %s296
        %s298 = smul.u32 4, %s24
        %s299 = smul.u32 2, %s26
        %s300 = smul.u32 32, %s26
        %p301 = scmp.lt.s32.totalorder %s25, 1
        %s302 = scalar_select %p301, %s25, 1
        %s303 = smul.addr %s302, 8
        %s304 = scalar_lea.vmem %s2, %s303
        %s305 = smul.u32 4, %s24
        %s306 = smul.u32 4, %s24
        %p308 = scmp.eq.s32.totalorder %s26, 0
        // Predicated region
        $region37: #{quantum_neural_block.1} parent=31 // pred_check
          %p309 = pneg %p308
        $region38: #{quantum_neural_block.1} parent=31 // pred_check_branch
          %311 = sbr.rel (%p309) target = $region40
        $region39: #{quantum_neural_block.1} parent=31 // pred_region
          %312 = vst [vmem:[%s281] sm:$0xff] 0.0
          %313 = vst [vmem:[%s281 + $0x8] sm:$0xff] 0.0
          %314 = vst [vmem:[%s281 + $0x10] sm:$0xff] 0.0
          %315 = vst [vmem:[%s281 + $0x18] sm:$0xff] 0.0
        $region40: #{quantum_neural_block.1} parent=31 // pred_fallthru
          _
        %v316 = vld [vmem:[%s281] sm:$0xff]
        %v317 = vld [vmem:[%s281 + $0x8] sm:$0xff]
        %v318 = vld [vmem:[%s281 + $0x10] sm:$0xff]
        %v319 = vld [vmem:[%s281 + $0x18] sm:$0xff]
        %v320 = vld [vmem:[%s297] sm:$0xff]
        %v321 = vld [vmem:[%s297 + $0x8] sm:$0xff]
        %v322 = vld [vmem:[%s297 + $0x10] sm:$0xff]
        %v323 = vld [vmem:[%s297 + $0x18] sm:$0xff]
        %v324 = vld [vmem:[%s246] sm:$0xf]
        %v325 = vld [vmem:[%s246 + $0x4] sm:$0xf]
        %v326 = vld [vmem:[%s246 + $0x8] sm:$0xf]
        %v327 = vld [vmem:[%s246 + $0xc] sm:$0xf]
        %v328 = vld [vmem:[%s246 + $0x10] sm:$0xf]
        %v329 = vld [vmem:[%s246 + $0x14] sm:$0xf]
        %v330 = vld [vmem:[%s246 + $0x18] sm:$0xf]
        %v331 = vld [vmem:[%s246 + $0x1c] sm:$0xf]
        %v332 = vld [vmem:[%s246 + $0x20] sm:$0xf]
        %v333 = vld [vmem:[%s246 + $0x24] sm:$0xf]
        %v334 = vld [vmem:[%s246 + $0x28] sm:$0xf]
        %v335 = vld [vmem:[%s246 + $0x2c] sm:$0xf]
        %v336 = vld [vmem:[%s246 + $0x30] sm:$0xf]
        %v337 = vld [vmem:[%s246 + $0x34] sm:$0xf]
        %v338 = vld [vmem:[%s246 + $0x38] sm:$0xf]
        %v339 = vld [vmem:[%s246 + $0x3c] sm:$0xf]
        %v340 = vld [vmem:[%s246 + $0x40] sm:$0xf]
        %v341 = vld [vmem:[%s246 + $0x44] sm:$0xf]
        %v342 = vld [vmem:[%s246 + $0x48] sm:$0xf]
        %v343 = vld [vmem:[%s246 + $0x4c] sm:$0xf]
        %v344 = vld [vmem:[%s246 + $0x50] sm:$0xf]
        %v345 = vld [vmem:[%s246 + $0x54] sm:$0xf]
        %v346 = vld [vmem:[%s246 + $0x58] sm:$0xf]
        %v347 = vld [vmem:[%s246 + $0x5c] sm:$0xf]
        %v348 = vld [vmem:[%s246 + $0x60] sm:$0xf]
        %v349 = vld [vmem:[%s246 + $0x64] sm:$0xf]
        %v350 = vld [vmem:[%s246 + $0x68] sm:$0xf]
        %v351 = vld [vmem:[%s246 + $0x6c] sm:$0xf]
        %v352 = vld [vmem:[%s246 + $0x70] sm:$0xf]
        %v353 = vld [vmem:[%s246 + $0x74] sm:$0xf]
        %v354 = vld [vmem:[%s246 + $0x78] sm:$0xf]
        %v355 = vld [vmem:[%s246 + $0x7c] sm:$0xf]
        %v360 = vunpack.c.l.b16 %v320
        %v361 = vunpack.c.h.b16 %v320
        %v362 = vunpack.c.l.b16 %v321
        %v363 = vunpack.c.h.b16 %v321
        %v364 = vunpack.c.l.b16 %v322
        %v365 = vunpack.c.h.b16 %v322
        %v366 = vunpack.c.l.b16 %v323
        %v367 = vunpack.c.h.b16 %v323
        %v368 = vpack.c.b16 %v362, %v360
        %v369 = vpack.c.b16 %v363, %v361
        %v370 = vpack.c.b16 %v366, %v364
        %v371 = vpack.c.b16 %v367, %v365
        %v408 = vunpack.c.l.b16 %v324
        %v409 = vunpack.c.l.b16 %v325
        %v410 = vunpack.c.l.b16 %v326
        %v411 = vunpack.c.l.b16 %v327
        %v412 = vunpack.c.l.b16 %v328
        %v413 = vunpack.c.l.b16 %v329
        %v414 = vunpack.c.l.b16 %v330
        %v415 = vunpack.c.l.b16 %v331
        %v416 = vunpack.c.l.b16 %v332
        %v417 = vunpack.c.l.b16 %v333
        %v418 = vunpack.c.l.b16 %v334
        %v419 = vunpack.c.l.b16 %v335
        %v420 = vunpack.c.l.b16 %v336
        %v421 = vunpack.c.l.b16 %v337
        %v422 = vunpack.c.l.b16 %v338
        %v423 = vunpack.c.l.b16 %v339
        %v424 = vunpack.c.l.b16 %v340
        %v425 = vunpack.c.l.b16 %v341
        %v426 = vunpack.c.l.b16 %v342
        %v427 = vunpack.c.l.b16 %v343
        %v428 = vunpack.c.l.b16 %v344
        %v429 = vunpack.c.l.b16 %v345
        %v430 = vunpack.c.l.b16 %v346
        %v431 = vunpack.c.l.b16 %v347
        %v432 = vunpack.c.l.b16 %v348
        %v433 = vunpack.c.l.b16 %v349
        %v434 = vunpack.c.l.b16 %v350
        %v435 = vunpack.c.l.b16 %v351
        %v436 = vunpack.c.l.b16 %v352
        %v437 = vunpack.c.l.b16 %v353
        %v438 = vunpack.c.l.b16 %v354
        %v439 = vunpack.c.l.b16 %v355
        %v440 = vpack.c.b16 %v409, %v408
        %v441 = vpack.c.b16 %v411, %v410
        %v442 = vpack.c.b16 %v413, %v412
        %v443 = vpack.c.b16 %v415, %v414
        %v444 = vpack.c.b16 %v417, %v416
        %v445 = vpack.c.b16 %v419, %v418
        %v446 = vpack.c.b16 %v421, %v420
        %v447 = vpack.c.b16 %v423, %v422
        %v448 = vpack.c.b16 %v425, %v424
        %v449 = vpack.c.b16 %v427, %v426
        %v450 = vpack.c.b16 %v429, %v428
        %v451 = vpack.c.b16 %v431, %v430
        %v452 = vpack.c.b16 %v433, %v432
        %v453 = vpack.c.b16 %v435, %v434
        %v454 = vpack.c.b16 %v437, %v436
        %v455 = vpack.c.b16 %v439, %v438
        %472 = vmatprep.subr.bf16.mxu0 0
        %473 = vmatpush1.bf16.msra.mxu0 %v447
        %474 = vmatprep.subr.bf16.mxu0 0
        %475 = vmatpush1.bf16.msra.mxu0 %v446
        %476 = vmatprep.subr.bf16.mxu0 0
        %477 = vmatpush1.bf16.msra.mxu0 %v445
        %478 = vmatprep.subr.bf16.mxu0 0
        %479 = vmatpush1.bf16.msra.mxu0 %v444
        %480 = vmatprep.subr.bf16.mxu0 0
        %481 = vmatpush1.bf16.msra.mxu0 %v443
        %482 = vmatprep.subr.bf16.mxu0 0
        %483 = vmatpush1.bf16.msra.mxu0 %v442
        %484 = vmatprep.subr.bf16.mxu0 0
        %485 = vmatpush1.bf16.msra.mxu0 %v441
        %486 = vmatprep.subr.bf16.mxu0 0
        %487 = vmatpush1.bf16.msra.mxu0 %v440
        %488 = vmatprep.subr.bf16.mxu0 0
        %489 = vmatpush2.bf16.msra.mxu0 %v455
        %490 = vmatprep.subr.bf16.mxu0 0
        %491 = vmatpush2.bf16.msra.mxu0 %v454
        %492 = vmatprep.subr.bf16.mxu0 0
        %493 = vmatpush2.bf16.msra.mxu0 %v453
        %494 = vmatprep.subr.bf16.mxu0 0
        %495 = vmatpush2.bf16.msra.mxu0 %v452
        %496 = vmatprep.subr.bf16.mxu0 0
        %497 = vmatpush2.bf16.msra.mxu0 %v451
        %498 = vmatprep.subr.bf16.mxu0 0
        %499 = vmatpush2.bf16.msra.mxu0 %v450
        %500 = vmatprep.subr.bf16.mxu0 0
        %501 = vmatpush2.bf16.msra.mxu0 %v449
        %502 = vmatprep.subr.bf16.mxu0 0
        %503 = vmatpush2.bf16.msra.mxu0 %v448
        %504 = vmatprep.mubr.bf16.mxu0 %v369
        %505 = vmatmul.mubr.bf16.gmra.mxu0 %v368
        %v506 = vpop.f32.mrf.mxu0
        %v507 = vadd.f32 0.0, %v506
        %v508 = vpop.f32.mrf.mxu0
        %v509 = vpop.f32.mrf.mxu0
        %v510 = vadd.f32 0.0, %v509
        %v511 = vpop.f32.mrf.mxu0
        %512 = vmatprep.mubr.bf16.mxu0 %v371
        %513 = vmatmul.mubr.bf16.gmra.mxu0 %v370
        %v514 = vpop.f32.mrf.mxu0
        %v515 = vadd.f32 0.0, %v514
        %v516 = vpop.f32.mrf.mxu0
        %v517 = vpop.f32.mrf.mxu0
        %v518 = vadd.f32 0.0, %v517
        %v519 = vpop.f32.mrf.mxu0
        %520 = vdwg.mxu0
        %v521 = vadd.f32 %v316, %v507
        %v522 = vadd.f32 %v317, %v510
        %v523 = vadd.f32 %v318, %v515
        %v524 = vadd.f32 %v319, %v518
        %525 = vst [vmem:[%s281] sm:$0xff] %v521
        %526 = vst [vmem:[%s281 + $0x8] sm:$0xff] %v522
        %527 = vst [vmem:[%s281 + $0x10] sm:$0xff] %v523
        %528 = vst [vmem:[%s281 + $0x18] sm:$0xff] %v524
        // Predicated region
        $region41: #{quantum_neural_block.1} parent=31 // pred_check
          %p529 = pneg %p308
        $region42: #{quantum_neural_block.1} parent=31 // pred_check_branch
          %531 = sbr.rel (%p529) target = $region44
        $region43: #{quantum_neural_block.1} parent=31 // pred_region
          %v532 = vld [vmem:[%s304] sm:$0xff]
          %v533 = vld [vmem:[%s281] sm:$0xff]
          %v534 = vld [vmem:[%s281 + $0x8] sm:$0xff]
          %v535 = vld [vmem:[%s281 + $0x10] sm:$0xff]
          %v536 = vld [vmem:[%s281 + $0x18] sm:$0xff]
          %v537 = vlaneseq
          %v538 = vshrl.u32 %v537, 7
          %v539 = vsub.s32 1, %v538
          %v540 = vrot.slane %v532, %v539
          %v541 = vmul.f32 %v533, %v540
          %v542 = vmul.f32 %v534, %v540
          %v543 = vmul.f32 %v535, %v540
          %v544 = vmul.f32 %v536, %v540
          %v545 = vlaneseq
          %v546 = vshrl.u32 %v545, 7
          %v547 = vsub.s32 3, %v546
          %v548 = vrot.slane %v532, %v547
          %v549 = vadd.f32 %v541, %v548
          %v550 = vadd.f32 %v542, %v548
          %v551 = vadd.f32 %v543, %v548
          %v552 = vadd.f32 %v544, %v548
          %553 = vst [vmem:[%s287] sm:$0xff] %v549
          %554 = vst [vmem:[%s287 + $0x8] sm:$0xff] %v550
          %555 = vst [vmem:[%s287 + $0x10] sm:$0xff] %v551
          %556 = vst [vmem:[%s287 + $0x18] sm:$0xff] %v552
          %v557 = vlaneseq
          %v558 = vshrl.u32 %v557, 7
          %v559 = vsub.s32 0, %v558
          %v560 = vrot.slane %v532, %v559
          %v561 = vmul.f32 %v533, %v560
          %v562 = vmul.f32 %v534, %v560
          %v563 = vmul.f32 %v535, %v560
          %v564 = vmul.f32 %v536, %v560
          %v565 = vlaneseq
          %v566 = vshrl.u32 %v565, 7
          %v567 = vsub.s32 2, %v566
          %v568 = vrot.slane %v532, %v567
          %v569 = vadd.f32 %v561, %v568
          %v570 = vadd.f32 %v562, %v568
          %v571 = vadd.f32 %v563, %v568
          %v572 = vadd.f32 %v564, %v568
          %573 = vst [vmem:[%s281] sm:$0xff] %v569
          %574 = vst [vmem:[%s281 + $0x8] sm:$0xff] %v570
          %575 = vst [vmem:[%s281 + $0x10] sm:$0xff] %v571
          %576 = vst [vmem:[%s281 + $0x18] sm:$0xff] %v572
        $region44: #{quantum_neural_block.1} parent=31 // pred_fallthru
          _
        %s577 = sand.u32 %s130, 1
        %s578 = sand.u32 %s130, 1
        %s579 = smul.addr %s578, 32
        %s580 = scalar_lea.vmem [#allocation4], %s579
        %s581 = sand.u32 %s158, 1
        %s582 = sand.u32 %s158, 1
        %s583 = smul.addr %s582, 32
        %s584 = scalar_lea.vmem [#allocation5], %s583
        // Predicated region
        $region45: #{quantum_neural_block.1} parent=31 // pred_check
          %p585 = pneg %p140
        $region46: #{quantum_neural_block.1} parent=31 // pred_check_branch
          %587 = sbr.rel (%p585) target = $region48
        $region47: #{quantum_neural_block.1} parent=31 // pred_region
          %s588 = smul.u32 4, %s24
          %s589 = smul.addr %s588, 2
          %s590 = sadd.s32 %s25, %s589
          %s591 = smul.addr %s590, 8
          %s592 = scalar_lea.vmem %s3, %s591
          // Predicated region
          $region49: #{quantum_neural_block.1} parent=47 // pred_check
            _
          $region50: #{quantum_neural_block.1} parent=47 // pred_check_branch
            %594 = sbr.rel (0) target = $region52
          $region51: #{quantum_neural_block.1} parent=47 // pred_region
            // Predicated region
            $region53: #{quantum_neural_block.1} parent=51 // pred_check
              _
            $region54: #{quantum_neural_block.1} parent=51 // pred_check_branch
              %596 = sbr.rel (0) target = $region56
            $region55: #{quantum_neural_block.1} parent=51 // pred_region
              // Predicated region
              $region68: #{quantum_neural_block.1} parent=55 // pred_check
                _
              $region69: #{quantum_neural_block.1} parent=55 // pred_check_branch
                %618 = sbr.rel (0) target = $region71
              $region70: #{quantum_neural_block.1} parent=55 // pred_region
                loop: start=0, step=1, limit=1
                $region72: #{quantum_neural_block.1} parent=70 // loop_pre_header
                  _
                $region73: #{quantum_neural_block.1} parent=70 // loop_header
                  %s620 = sphi 0, %s624
                  %p621 = scmp.ge.s32.totalorder %s620, 1
                  %s625 = sphi %s580, %s580
                  %s626 = sphi %s592, %s592
                $region74: #{quantum_neural_block.1} parent=70 // loop_header_branch
                  %623 = sbr.rel (%p621) target = $region78
                $region75: #{quantum_neural_block.1} parent=70 // loop_body
                  %v627 = vld [vmem:[%s625] sm:$0xff]
                  %628 = vst [vmem:[%s626] sm:$0xff] %v627
                  %v629 = vld [vmem:[%s625 + $0x8] sm:$0xff]
                  %630 = vst [vmem:[%s626 + $0x10] sm:$0xff] %v629
                  %v631 = vld [vmem:[%s625 + $0x10] sm:$0xff]
                  %632 = vst [vmem:[%s626 + $0x20] sm:$0xff] %v631
                  %v633 = vld [vmem:[%s625 + $0x18] sm:$0xff]
                  %634 = vst [vmem:[%s626 + $0x30] sm:$0xff] %v633
                $region76: #{quantum_neural_block.1} parent=70 // loop_footer
                  %s624 = sadd.s32 1, %s620
                $region77: #{quantum_neural_block.1} parent=70 // loop_footer_branch
                  %619 = sbr.rel target = $region73
                $region78: #{quantum_neural_block.1} parent=70 // loop_exit
                  _
              $region71: #{quantum_neural_block.1} parent=55 // pred_fallthru
                _
              // Predicated region
              $region79: #{quantum_neural_block.1} parent=55 // pred_check
                _
              $region80: #{quantum_neural_block.1} parent=55 // pred_check_branch
                %636 = sbr.rel target = $region82
              $region81: #{quantum_neural_block.1} parent=55 // pred_region
                _
              $region82: #{quantum_neural_block.1} parent=55 // pred_fallthru
                _
            $region56: #{quantum_neural_block.1} parent=51 // pred_fallthru
              _
            // Predicated region
            $region57: #{quantum_neural_block.1} parent=51 // pred_check
              _
            $region58: #{quantum_neural_block.1} parent=51 // pred_check_branch
              %598 = sbr.rel target = $region60
            $region59: #{quantum_neural_block.1} parent=51 // pred_region
              %s600 = ssub.s32 256, 1
              loop: start=0, step=1, limit=1
              $region61: #{quantum_neural_block.1} parent=59 // loop_pre_header
                _
              $region62: #{quantum_neural_block.1} parent=59 // loop_header
                %s602 = sphi 0, %s606
                %p603 = scmp.ge.s32.totalorder %s602, 1
                %s607 = sphi %s580, %s580
                %s608 = sphi %s592, %s592
              $region63: #{quantum_neural_block.1} parent=59 // loop_header_branch
                %605 = sbr.rel (%p603) target = $region67
              $region64: #{quantum_neural_block.1} parent=59 // loop_body
                %v609 = vld [vmem:[%s607] sm:%s600]
                %610 = vst [vmem:[%s608] sm:%s600] %v609
                %v611 = vld [vmem:[%s607 + $0x8] sm:%s600]
                %612 = vst [vmem:[%s608 + $0x10] sm:%s600] %v611
                %v613 = vld [vmem:[%s607 + $0x10] sm:%s600]
                %614 = vst [vmem:[%s608 + $0x20] sm:%s600] %v613
                %v615 = vld [vmem:[%s607 + $0x18] sm:%s600]
                %616 = vst [vmem:[%s608 + $0x30] sm:%s600] %v615
              $region65: #{quantum_neural_block.1} parent=59 // loop_footer
                %s606 = sadd.s32 1, %s602
              $region66: #{quantum_neural_block.1} parent=59 // loop_footer_branch
                %601 = sbr.rel target = $region62
              $region67: #{quantum_neural_block.1} parent=59 // loop_exit
                _
            $region60: #{quantum_neural_block.1} parent=51 // pred_fallthru
              _
          $region52: #{quantum_neural_block.1} parent=47 // pred_fallthru
            _
          %637 = vnop
        $region48: #{quantum_neural_block.1} parent=31 // pred_fallthru
          _
        // Predicated region
        $region83: #{quantum_neural_block.1} parent=31 // pred_check
          %p638 = pneg %p168
        $region84: #{quantum_neural_block.1} parent=31 // pred_check_branch
          %640 = sbr.rel (%p638) target = $region86
        $region85: #{quantum_neural_block.1} parent=31 // pred_region
          %s641 = smul.u32 4, %s24
          %s642 = smul.addr %s641, 2
          %s643 = sadd.s32 %s25, %s642
          %s644 = smul.addr %s643, 8
          %s645 = scalar_lea.vmem %s4, %s644
          // Predicated region
          $region87: #{quantum_neural_block.1} parent=85 // pred_check
            _
          $region88: #{quantum_neural_block.1} parent=85 // pred_check_branch
            %647 = sbr.rel (0) target = $region90
          $region89: #{quantum_neural_block.1} parent=85 // pred_region
            // Predicated region
            $region91: #{quantum_neural_block.1} parent=89 // pred_check
              _
            $region92: #{quantum_neural_block.1} parent=89 // pred_check_branch
              %649 = sbr.rel (0) target = $region94
            $region93: #{quantum_neural_block.1} parent=89 // pred_region
              // Predicated region
              $region106: #{quantum_neural_block.1} parent=93 // pred_check
                _
              $region107: #{quantum_neural_block.1} parent=93 // pred_check_branch
                %671 = sbr.rel (0) target = $region109
              $region108: #{quantum_neural_block.1} parent=93 // pred_region
                loop: start=0, step=1, limit=1
                $region110: #{quantum_neural_block.1} parent=108 // loop_pre_header
                  _
                $region111: #{quantum_neural_block.1} parent=108 // loop_header
                  %s673 = sphi 0, %s677
                  %p674 = scmp.ge.s32.totalorder %s673, 1
                  %s678 = sphi %s584, %s584
                  %s679 = sphi %s645, %s645
                $region112: #{quantum_neural_block.1} parent=108 // loop_header_branch
                  %676 = sbr.rel (%p674) target = $region116
                $region113: #{quantum_neural_block.1} parent=108 // loop_body
                  %v680 = vld [vmem:[%s678] sm:$0xff]
                  %681 = vst [vmem:[%s679] sm:$0xff] %v680
                  %v682 = vld [vmem:[%s678 + $0x8] sm:$0xff]
                  %683 = vst [vmem:[%s679 + $0x10] sm:$0xff] %v682
                  %v684 = vld [vmem:[%s678 + $0x10] sm:$0xff]
                  %685 = vst [vmem:[%s679 + $0x20] sm:$0xff] %v684
                  %v686 = vld [vmem:[%s678 + $0x18] sm:$0xff]
                  %687 = vst [vmem:[%s679 + $0x30] sm:$0xff] %v686
                $region114: #{quantum_neural_block.1} parent=108 // loop_footer
                  %s677 = sadd.s32 1, %s673
                $region115: #{quantum_neural_block.1} parent=108 // loop_footer_branch
                  %672 = sbr.rel target = $region111
                $region116: #{quantum_neural_block.1} parent=108 // loop_exit
                  _
              $region109: #{quantum_neural_block.1} parent=93 // pred_fallthru
                _
              // Predicated region
              $region117: #{quantum_neural_block.1} parent=93 // pred_check
                _
              $region118: #{quantum_neural_block.1} parent=93 // pred_check_branch
                %689 = sbr.rel target = $region120
              $region119: #{quantum_neural_block.1} parent=93 // pred_region
                _
              $region120: #{quantum_neural_block.1} parent=93 // pred_fallthru
                _
            $region94: #{quantum_neural_block.1} parent=89 // pred_fallthru
              _
            // Predicated region
            $region95: #{quantum_neural_block.1} parent=89 // pred_check
              _
            $region96: #{quantum_neural_block.1} parent=89 // pred_check_branch
              %651 = sbr.rel target = $region98
            $region97: #{quantum_neural_block.1} parent=89 // pred_region
              %s653 = ssub.s32 256, 1
              loop: start=0, step=1, limit=1
              $region99: #{quantum_neural_block.1} parent=97 // loop_pre_header
                _
              $region100: #{quantum_neural_block.1} parent=97 // loop_header
                %s655 = sphi 0, %s659
                %p656 = scmp.ge.s32.totalorder %s655, 1
                %s660 = sphi %s584, %s584
                %s661 = sphi %s645, %s645
              $region101: #{quantum_neural_block.1} parent=97 // loop_header_branch
                %658 = sbr.rel (%p656) target = $region105
              $region102: #{quantum_neural_block.1} parent=97 // loop_body
                %v662 = vld [vmem:[%s660] sm:%s653]
                %663 = vst [vmem:[%s661] sm:%s653] %v662
                %v664 = vld [vmem:[%s660 + $0x8] sm:%s653]
                %665 = vst [vmem:[%s661 + $0x10] sm:%s653] %v664
                %v666 = vld [vmem:[%s660 + $0x10] sm:%s653]
                %667 = vst [vmem:[%s661 + $0x20] sm:%s653] %v666
                %v668 = vld [vmem:[%s660 + $0x18] sm:%s653]
                %669 = vst [vmem:[%s661 + $0x30] sm:%s653] %v668
              $region103: #{quantum_neural_block.1} parent=97 // loop_footer
                %s659 = sadd.s32 1, %s655
              $region104: #{quantum_neural_block.1} parent=97 // loop_footer_branch
                %654 = sbr.rel target = $region100
              $region105: #{quantum_neural_block.1} parent=97 // loop_exit
                _
            $region98: #{quantum_neural_block.1} parent=89 // pred_fallthru
              _
          $region90: #{quantum_neural_block.1} parent=85 // pred_fallthru
            _
          %690 = vnop
        $region86: #{quantum_neural_block.1} parent=31 // pred_fallthru
          _
      $region32: #{quantum_neural_block.1} parent=5 // pred_fallthru
        _
      %p691 = scmp.le.s32.totalorder 2, %s14
      // Predicated region
      $region121: #{quantum_neural_block.1} parent=5 // pred_check
        %p692 = pneg %p691
      $region122: #{quantum_neural_block.1} parent=5 // pred_check_branch
        %694 = sbr.rel (%p692) target = $region124
      $region123: #{quantum_neural_block.1} parent=5 // pred_region
        %s695 = ssub.s32 %s14, 2
        // Predicated region
        $region125: #{quantum_neural_block.1} parent=123 // pred_check
          %p696 = pneg %p146
        $region126: #{quantum_neural_block.1} parent=123 // pred_check_branch
          %698 = sbr.rel (%p696) target = $region128
        $region127: #{quantum_neural_block.1} parent=123 // pred_region
          %s699 = sand.u32 %s131, 1
          %s700 = sand.u32 %s131, 1
          %s701 = smul.addr %s700, 32
          %s702 = scalar_lea.vmem [#allocation4], %s701
        $region128: #{quantum_neural_block.1} parent=123 // pred_fallthru
          _
        // Predicated region
        $region129: #{quantum_neural_block.1} parent=123 // pred_check
          %p703 = pneg %p174
        $region130: #{quantum_neural_block.1} parent=123 // pred_check_branch
          %705 = sbr.rel (%p703) target = $region132
        $region131: #{quantum_neural_block.1} parent=123 // pred_region
          %s706 = sand.u32 %s159, 1
          %s707 = sand.u32 %s159, 1
          %s708 = smul.addr %s707, 32
          %s709 = scalar_lea.vmem [#allocation5], %s708
        $region132: #{quantum_neural_block.1} parent=123 // pred_fallthru
          _
      $region124: #{quantum_neural_block.1} parent=5 // pred_fallthru
        _
    $region6: #{quantum_neural_block.1} parent=1 // loop_footer
      %s18 = sadd.s32 1, %s14
    $region7: #{quantum_neural_block.1} parent=1 // loop_footer_branch
      %13 = sbr.rel target = $region3
    $region8: #{quantum_neural_block.1} parent=1 // loop_exit
      _
    %710 = vsyncpa [#allocation3], 1
    %s711 = scalar_lea.sflag [#allocation3], 1
    %712 = vsyncpa %s711, 1

</llo_original>
